<compile_context>
chip_gen: v6e
topology: v6e:2x2x1
jax: 0.10.0
libtpu: 0.0.40
codegen_flags: <defaults>
</compile_context>

<pallas_src>
import functools

import jax
import jax.numpy as jnp
from jax.experimental import pallas as pl
from jax.experimental.pallas import tpu as pltpu


def _pow_gamma(base, gamma):
    """base**gamma; small non-negative integer gamma -> VPU multiplies (no EUP)."""
    g = float(gamma)
    if g.is_integer() and 0 <= int(g) <= 8:
        gi = int(g)
        if gi == 0:
            return jnp.ones_like(base)
        r = base
        for _ in range(gi - 1):
            r = r * base
        return r
    # Non-integer gamma: exp(gamma*log(x)) on the EUP (base already clamped >= 0).
    return jnp.power(base, g)


def _nfl_kernel(x_ref, t_ref, out_ref, acc_ref, *,
                gamma, scale, n_rows, tm, blocks_per_part):
    p = pl.program_id(0)      # "parallel" partition (both TCs on v7x)
    i = pl.program_id(1)      # "arbitrary" row-block loop within the partition

    # (Re-)init the per-partition row-loss accumulator.
    @pl.when(i == 0)
    def _():
        acc_ref[...] = jnp.zeros_like(acc_ref)

    x = x_ref[...].astype(jnp.float32)                      # (tm, C)
    t = t_ref[...]                                          # (tm, 1) int32
    C = x.shape[1]

    # Row validity mask: handles N % tm != 0 and the clamped duplicate blocks
    # when n_blocks is not divisible by num_parts.
    block_row = p * blocks_per_part + i
    row = block_row * tm + jax.lax.broadcasted_iota(jnp.int32, (tm, 1), 0)
    valid = row < n_rows                                    # (tm, 1)

    # Stable log_softmax; exp(z) computed ONCE and reused for pt_all.
    m = jnp.max(x, axis=1, keepdims=True)
    z = x - m
    ez = jnp.exp(z)                                         # only (tm, C) EUP op
    s = jnp.sum(ez, axis=1, keepdims=True)                  # (tm, 1)
    logpt = z - jnp.log(s)                                  # (tm, C)
    pt_all = ez * (1.0 / s)                                 # == exp(logpt)

    # normalizor = sum_c -(1 - pt)^gamma * logpt
    w_all = _pow_gamma(jnp.maximum(1.0 - pt_all, 0.0), gamma)
    normalizor = jnp.sum(-w_all * logpt, axis=1, keepdims=True)   # (tm, 1)

    # gather(logpt, 1, target) via one-hot lane compare (no dynamic vreg gather).
    col = jax.lax.broadcasted_iota(jnp.int32, (tm, C), 1)
    lp = jnp.sum(jnp.where(col == t, logpt, 0.0), axis=1, keepdims=True)  # (tm,1)

    pt = jnp.exp(lp)                                        # (tm, 1)
    loss = -_pow_gamma(jnp.maximum(1.0 - pt, 0.0), gamma) * lp
    loss = scale * loss / normalizor                        # (tm, 1)
    loss = jnp.where(valid, loss, 0.0)                      # padded rows -> 0

    acc_ref[...] += loss

    # Epilogue: one cross-lane reduce, lane-dense (8,128) output block.
    @pl.when(i == pl.num_programs(1) - 1)
    def _():
        total = jnp.sum(acc_ref[...], keepdims=True)        # (1, 1)
        out_ref[...] = jnp.broadcast_to(total[None], out_ref.shape).astype(
            jnp.float32)


def _pick_tm(n_rows, n_classes, itemsize):
    # Largest row tile whose double-buffered logits block stays inside a
    # ~24 MiB VMEM budget (leaves headroom on v7x's 64 MiB physical VMEM).
    budget = 24 * 1024 * 1024
    per_row = max(n_classes, 128) * itemsize                # lane padding to 128
    tm = budget // (2 * per_row)
    tm = max(8, min(512, (tm // 8) * 8))
    if n_rows <= tm:
        return n_rows                                       # full-dim block: always legal
    return tm


def normalized_focal_loss(x, target, *, gamma=0.0, scale=1.0, size_average=True,
                          tm=None):
    """x: (N, C) float logits; target: (N,) int class indices. Returns scalar."""
    N, C = x.shape
    t2 = target.reshape(N, 1).astype(jnp.int32)

    itemsize = jnp.dtype(x.dtype).itemsize
    if tm is None:
        # NOTE: callers with a bf16 accuracy budget can pass bf16 logits; only
        # the HBM bytes change (math is f32 inside the kernel).
        tm = _pick_tm(N, C, itemsize)
    tm = int(tm)

    n_blocks = (N + tm - 1) // tm
    num_parts = 2 if n_blocks >= 2 else 1      # shard row loop across 2 TCs (v7x)
    blocks_per_part = (n_blocks + num_parts - 1) // num_parts
    last_block = n_blocks - 1

    # Clamp the block index so out-of-range partitions re-read the last valid
    # block (their rows are masked out inside the kernel).
    def x_map(p, i):
        return (jnp.minimum(p * blocks_per_part + i, last_block), 0)

    def t_map(p, i):
        return (jnp.minimum(p * blocks_per_part + i, last_block), 0)

    kernel = functools.partial(
        _nfl_kernel, gamma=float(gamma), scale=float(scale),
        n_rows=N, tm=tm, blocks_per_part=blocks_per_part)

    # VMEM estimate (lane-padded) with headroom, capped below v7x physical VMEM.
    est = (2 * tm * max(C, 128) * itemsize      # x double buffer
           + 2 * tm * 128 * 4                   # target double buffer
           + tm * 128 * 4                       # acc scratch
           + 2 * 8 * 128 * 4)                   # out block
    vmem_limit = int(min(48 * 1024 * 1024, max(32 * 1024 * 1024, 2 * est)))

    out = pl.pallas_call(
        kernel,
        out_shape=jax.ShapeDtypeStruct((num_parts, 8, 128), jnp.float32),
        grid_spec=pltpu.PrefetchScalarGridSpec(
            num_scalar_prefetch=0,
            grid=(num_parts, blocks_per_part),
            in_specs=[
                pl.BlockSpec((tm, C), x_map),
                pl.BlockSpec((tm, 1), t_map),
            ],
            out_specs=pl.BlockSpec((1, 8, 128), lambda p, i: (p, 0, 0)),
            scratch_shapes=[pltpu.VMEM((tm, 1), jnp.float32)],
        ),
        compiler_params=pltpu.CompilerParams(
            dimension_semantics=("parallel", "arbitrary"),
            vmem_limit_bytes=vmem_limit),
    )(x, t2)

    total = jnp.sum(out[:, 0, 0])
    if size_average:
        total = total / jnp.float32(N)
    return total


def _reference(x, target, *, gamma, scale, size_average):
    logpt = jax.nn.log_softmax(x.astype(jnp.float32), axis=1)
    normalizor = jnp.sum(-jnp.power(1.0 - jnp.exp(logpt), gamma) * logpt, axis=1)
    lp = jnp.take_along_axis(logpt, target[:, None].astype(jnp.int32), axis=1)[:, 0]
    pt = jnp.exp(lp)
    loss = -jnp.power(1.0 - pt, gamma) * lp
    loss = scale * loss / normalizor
    return loss.mean() if size_average else loss.sum()


if __name__ == "__main__":
    key = jax.random.PRNGKey(0)
    kx, kt = jax.random.split(key)

    N, num_classes = 20, 10        # N not a multiple of 8 -> exercises masking
    x = jax.random.normal(kx, (N, num_classes), dtype=jnp.float32)
    target = jax.random.randint(kt, (N,), 0, num_classes, dtype=jnp.int32)

    cases = [
        dict(gamma=2.0, scale=1.0, size_average=True, tm=None),   # auto tile
        dict(gamma=2.0, scale=1.0, size_average=True, tm=8),      # tiled + 2-way split
        dict(gamma=1.5, scale=2.0, size_average=False, tm=8),     # non-integer gamma, sum
    ]
    for c in cases:
        out = normalized_focal_loss(x, target, gamma=c["gamma"], scale=c["scale"],
                                    size_average=c["size_average"], tm=c["tm"])
        out = jax.block_until_ready(out)
        ref = _reference(x, target, gamma=c["gamma"], scale=c["scale"],
                         size_average=c["size_average"])
        assert jnp.allclose(out, ref, rtol=1e-4, atol=1e-5), (c, out, ref)

    print("KERNEL_OK")
</pallas_src>

<mosaic_0001>
module attributes {stable_mosaic.version = 11 : i64} {
  func.func @_nfl_kernel(%arg0: i32, %arg1: i32, %arg2: memref<20x10xf32, #tpu.memory_space<vmem>>, %arg3: memref<20x1xi32, #tpu.memory_space<vmem>>, %arg4: memref<1x8x128xf32, #tpu.memory_space<vmem>>, %arg5: memref<20x1xf32, #tpu.memory_space<vmem>>) attributes {dimension_semantics = [#tpu.dimension_semantics<parallel>, #tpu.dimension_semantics<arbitrary>], iteration_bounds = array<i64: 1, 1>, scalar_prefetch = 0 : i64, scratch_operands = 1 : i64, tpu.core_type = #tpu.core_type<tc>, window_params = [{transform_indices = @transform_0, window_bounds = array<i64: 20, 10>}, {transform_indices = @transform_1, window_bounds = array<i64: 20, 1>}, {transform_indices = @transform_2, window_bounds = array<i64: 1, 8, 128>}]} {
    %c0_i32 = arith.constant 0 : i32
    %0 = arith.cmpi eq, %arg1, %c0_i32 : i32
    %1 = arith.extui %0 : i1 to i32
    %c0_i32_0 = arith.constant 0 : i32
    %2 = arith.cmpi ne, %1, %c0_i32_0 : i32
    scf.if %2 {
      %cst_24 = arith.constant 0.000000e+00 : f32
      %64 = vector.broadcast %cst_24 : f32 to vector<20x1xf32>
      %c0_25 = arith.constant 0 : index
      %c0_26 = arith.constant 0 : index
      %65 = vector.load %arg5[%c0_25, %c0_26] : memref<20x1xf32, #tpu.memory_space<vmem>>, vector<20x1xf32>
      tpu.vector_store %arg5[%c0_25, %c0_26], %64 {strides = array<i32>} : memref<20x1xf32, #tpu.memory_space<vmem>>, vector<20x1xf32>,
    } else {
    }
    %c0 = arith.constant 0 : index
    %c0_1 = arith.constant 0 : index
    %3 = vector.load %arg2[%c0, %c0_1] : memref<20x10xf32, #tpu.memory_space<vmem>>, vector<20x10xf32>
    %c0_2 = arith.constant 0 : index
    %c0_3 = arith.constant 0 : index
    %4 = vector.load %arg3[%c0_2, %c0_3] : memref<20x1xi32, #tpu.memory_space<vmem>>, vector<20x1xi32>
    %c1_i32 = arith.constant 1 : i32
    %5 = arith.muli %arg0, %c1_i32 : i32
    %6 = arith.addi %5, %arg1 : i32
    %c20_i32 = arith.constant 20 : i32
    %7 = arith.muli %6, %c20_i32 : i32
    %8 = tpu.iota {dimensions = array<i32: 0>} : vector<20x1xi32>
    %9 = vector.broadcast %7 : i32 to vector<20x1xi32>
    %10 = arith.addi %9, %8 : vector<20x1xi32>
    %c20_i32_4 = arith.constant 20 : i32
    %11 = vector.broadcast %c20_i32_4 : i32 to vector<20x1xi32>
    %12 = arith.cmpi slt, %10, %11 : vector<20x1xi32>
    %cst = arith.constant dense<0xFF800000> : vector<20xf32>
    %13 = vector.multi_reduction <maximumf>, %3, %cst [1] : vector<20x10xf32> to vector<20xf32>
    %14 = vector.shape_cast %13 : vector<20xf32> to vector<20x1xf32>
    %15 = vector.broadcast %14 : vector<20x1xf32> to vector<20x10xf32>
    %16 = arith.subf %3, %15 : vector<20x10xf32>
    %17 = math.exp %16 : vector<20x10xf32>
    %cst_5 = arith.constant dense<0.000000e+00> : vector<20xf32>
    %18 = vector.multi_reduction <add>, %17, %cst_5 [1] : vector<20x10xf32> to vector<20xf32>
    %19 = vector.shape_cast %18 : vector<20xf32> to vector<20x1xf32>
    %20 = math.log %19 : vector<20x1xf32>
    %21 = vector.broadcast %20 : vector<20x1xf32> to vector<20x10xf32>
    %22 = arith.subf %16, %21 : vector<20x10xf32>
    %cst_6 = arith.constant 1.000000e+00 : f32
    %23 = vector.broadcast %cst_6 : f32 to vector<20x1xf32>
    %24 = arith.divf %23, %19 : vector<20x1xf32>
    %25 = vector.broadcast %24 : vector<20x1xf32> to vector<20x10xf32>
    %26 = arith.mulf %17, %25 : vector<20x10xf32>
    %cst_7 = arith.constant 1.000000e+00 : f32
    %27 = vector.broadcast %cst_7 : f32 to vector<20x10xf32>
    %28 = arith.subf %27, %26 : vector<20x10xf32>
    %cst_8 = arith.constant 0.000000e+00 : f32
    %29 = vector.broadcast %cst_8 : f32 to vector<20x10xf32>
    %30 = arith.maximumf %28, %29 : vector<20x10xf32>
    %31 = arith.mulf %30, %30 : vector<20x10xf32>
    %cst_9 = arith.constant 0.000000e+00 : f32
    %32 = vector.broadcast %cst_9 : f32 to vector<20x10xf32>
    %33 = arith.subf %32, %31 : vector<20x10xf32>
    %34 = arith.mulf %33, %22 : vector<20x10xf32>
    %cst_10 = arith.constant dense<0.000000e+00> : vector<20xf32>
    %35 = vector.multi_reduction <add>, %34, %cst_10 [1] : vector<20x10xf32> to vector<20xf32>
    %36 = vector.shape_cast %35 : vector<20xf32> to vector<20x1xf32>
    %37 = tpu.iota {dimensions = array<i32: 1>} : vector<20x10xi32>
    %38 = vector.broadcast %4 : vector<20x1xi32> to vector<20x10xi32>
    %39 = arith.cmpi eq, %37, %38 : vector<20x10xi32>
    %cst_11 = arith.constant 0.000000e+00 : f32
    %40 = vector.broadcast %cst_11 : f32 to vector<20x10xf32>
    %41 = arith.select %39, %22, %40 : vector<20x10xi1>, vector<20x10xf32>
    %cst_12 = arith.constant dense<0.000000e+00> : vector<20xf32>
    %42 = vector.multi_reduction <add>, %41, %cst_12 [1] : vector<20x10xf32> to vector<20xf32>
    %43 = vector.shape_cast %42 : vector<20xf32> to vector<20x1xf32>
    %44 = math.exp %43 : vector<20x1xf32>
    %cst_13 = arith.constant 1.000000e+00 : f32
    %45 = vector.broadcast %cst_13 : f32 to vector<20x1xf32>
    %46 = arith.subf %45, %44 : vector<20x1xf32>
    %cst_14 = arith.constant 0.000000e+00 : f32
    %47 = vector.broadcast %cst_14 : f32 to vector<20x1xf32>
    %48 = arith.maximumf %46, %47 : vector<20x1xf32>
    %49 = arith.mulf %48, %48 : vector<20x1xf32>
    %cst_15 = arith.constant 0.000000e+00 : f32
    %50 = vector.broadcast %cst_15 : f32 to vector<20x1xf32>
    %51 = arith.subf %50, %49 : vector<20x1xf32>
    %52 = arith.mulf %51, %43 : vector<20x1xf32>
    %cst_16 = arith.constant 1.000000e+00 : f32
    %53 = vector.broadcast %cst_16 : f32 to vector<20x1xf32>
    %54 = arith.mulf %53, %52 : vector<20x1xf32>
    %55 = arith.divf %54, %36 : vector<20x1xf32>
    %cst_17 = arith.constant 0.000000e+00 : f32
    %56 = vector.broadcast %cst_17 : f32 to vector<20x1xf32>
    %57 = arith.select %12, %55, %56 : vector<20x1xi1>, vector<20x1xf32>
    %c0_18 = arith.constant 0 : index
    %c0_19 = arith.constant 0 : index
    %58 = vector.load %arg5[%c0_18, %c0_19] : memref<20x1xf32, #tpu.memory_space<vmem>>, vector<20x1xf32>
    %59 = arith.addf %58, %57 : vector<20x1xf32>
    %c0_20 = arith.constant 0 : index
    %c0_21 = arith.constant 0 : index
    %60 = vector.load %arg5[%c0_20, %c0_21] : memref<20x1xf32, #tpu.memory_space<vmem>>, vector<20x1xf32>
    tpu.vector_store %arg5[%c0_20, %c0_21], %59 {strides = array<i32>} : memref<20x1xf32, #tpu.memory_space<vmem>>, vector<20x1xf32>,
    %c0_i32_22 = arith.constant 0 : i32
    %61 = arith.cmpi eq, %arg1, %c0_i32_22 : i32
    %62 = arith.extui %61 : i1 to i32
    %c0_i32_23 = arith.constant 0 : i32
    %63 = arith.cmpi ne, %62, %c0_i32_23 : i32
    scf.if %63 {
      %c0_24 = arith.constant 0 : index
      %c0_25 = arith.constant 0 : index
      %64 = vector.load %arg5[%c0_24, %c0_25] : memref<20x1xf32, #tpu.memory_space<vmem>>, vector<20x1xf32>
      %65 = vector.shape_cast %64 : vector<20x1xf32> to vector<1x20x1xf32>
      %cst_26 = arith.constant dense<0.000000e+00> : vector<1xf32>
      %66 = vector.multi_reduction <add>, %65, %cst_26 [1, 2] : vector<1x20x1xf32> to vector<1xf32>
      %67 = vector.shape_cast %66 : vector<1xf32> to vector<1x1x1xf32>
      %68 = vector.extract %67[0, 0, 0] : f32 from vector<1x1x1xf32>
      %69 = vector.broadcast %68 : f32 to vector<1x1xf32>
      %70 = vector.shape_cast %69 : vector<1x1xf32> to vector<1x1x1xf32>
      %71 = vector.shape_cast %70 : vector<1x1x1xf32> to vector<1x1x1xf32>
      %72 = vector.broadcast %71 : vector<1x1x1xf32> to vector<1x8x128xf32>
      %c0_27 = arith.constant 0 : index
      %c0_28 = arith.constant 0 : index
      %c0_29 = arith.constant 0 : index
      %73 = vector.load %arg4[%c0_27, %c0_28, %c0_29] : memref<1x8x128xf32, #tpu.memory_space<vmem>>, vector<1x8x128xf32>
      tpu.vector_store %arg4[%c0_27, %c0_28, %c0_29], %72 {strides = array<i32>} : memref<1x8x128xf32, #tpu.memory_space<vmem>>, vector<1x8x128xf32>,
    } else {
    }
    return
  }
  func.func @transform_0(%arg0: i32, %arg1: i32) -> (i32, i32) {
    %c1_i32 = arith.constant 1 : i32
    %0 = arith.muli %arg0, %c1_i32 : i32
    %1 = arith.addi %0, %arg1 : i32
    %c0_i32 = arith.constant 0 : i32
    %2 = arith.minsi %1, %c0_i32 : i32
    %c0_i32_0 = arith.constant 0 : i32
    %c0_i32_1 = arith.constant 0 : i32
    return %2, %c0_i32_0 : i32, i32
  }
  func.func @transform_1(%arg0: i32, %arg1: i32) -> (i32, i32) {
    %c1_i32 = arith.constant 1 : i32
    %0 = arith.muli %arg0, %c1_i32 : i32
    %1 = arith.addi %0, %arg1 : i32
    %c0_i32 = arith.constant 0 : i32
    %2 = arith.minsi %1, %c0_i32 : i32
    %c0_i32_0 = arith.constant 0 : i32
    %c0_i32_1 = arith.constant 0 : i32
    return %2, %c0_i32_0 : i32, i32
  }
  func.func @transform_2(%arg0: i32, %arg1: i32) -> (i32, i32, i32) {
    %c0_i32 = arith.constant 0 : i32
    %c0_i32_0 = arith.constant 0 : i32
    %c0_i32_1 = arith.constant 0 : i32
    return %arg0, %c0_i32, %c0_i32_0 : i32, i32, i32
  }
}

</mosaic_0001>

<llo_original>
// kernel: tpu_custom_call.1
$region0: #{tpu_custom_call.1}
  #allocation0 [shape = 'u32[]', space=smem, size = 0x4, offset = 0x4, fixed_abs, tag = 'smem constant byte address 0x4 - core index']
  #allocation1 [shape = 'u32[144,128]{1,0:T(1,128)}', space=vmem, size = 0x12000, scoped, tag = 'internal scratch']
  #allocation2 [shape = 'f32[20,1]{1,0:T(8,128)}', space=vmem, size = 0x3000, scoped, tag = 'scratch operand']
  %s0 = inlined_call_operand.vmem [shape: f32[20,10], index: 0, kind: input, shape index: {}]
  %s1 = inlined_call_operand.vmem [shape: s32[20,1], index: 1, kind: input, shape index: {}]
  %s2 = inlined_call_operand.hbm [shape: f32[1,8,128], index: 2, kind: output, shape index: {}]
  %s3 = sld [smem:[#allocation0]]
  $region26: #{tpu_custom_call.1} parent=0
    _
  %s5 = ssub.s32 1, %s3
  %s6 = scalar_select 0, %s5, %s3
  $region1: #{tpu_custom_call.1} parent=0
    #allocation3 [shape = 'u8[4096]{0}', space=vmem, size = 0x1000, scoped, tag = 'output window, operand 0, single buffered']
    #allocation4 [shape = 's32[1]{0}', space=sflag, size = 0x4, scoped, tag = 'scoped memory for tpu_custom_call.1']
    %7 = vsyncpa [#allocation4], 0
    // Predicated region
    $region2: #{tpu_custom_call.1} parent=1 // pred_check
      _
    $region3: #{tpu_custom_call.1} parent=1 // pred_check_branch
      %9 = sbr.rel (0) target = $region5
    $region4: #{tpu_custom_call.1} parent=1 // pred_region
      %s10 = sadd.s32 0, 0
      %p11 = scmp.lt.s32.totalorder %s10, 0
      %s12 = scalar_select %p11, %s10, 0
      %s13 = smul.u32 3, %s12
      %p14 = scmp.lt.s32.totalorder %s13, 2
      %s15 = scalar_select %p14, %s13, 2
      %s16 = smul.addr %s15, 8
      %s17 = scalar_lea.vmem %s0, %s16
      %s18 = sadd.s32 0, 0
      %p19 = scmp.lt.s32.totalorder %s18, 0
      %s20 = scalar_select %p19, %s18, 0
      %s21 = smul.u32 3, %s20
    $region5: #{tpu_custom_call.1} parent=1 // pred_fallthru
      _
    // Predicated region
    $region6: #{tpu_custom_call.1} parent=1 // pred_check
      _
    $region7: #{tpu_custom_call.1} parent=1 // pred_check_branch
      %23 = sbr.rel (0) target = $region9
    $region8: #{tpu_custom_call.1} parent=1 // pred_region
      %s24 = sadd.s32 0, 0
      %p25 = scmp.lt.s32.totalorder %s24, 0
      %s26 = scalar_select %p25, %s24, 0
      %s27 = smul.u32 3, %s26
      %p28 = scmp.lt.s32.totalorder %s27, 2
      %s29 = scalar_select %p28, %s27, 2
      %s30 = smul.addr %s29, 8
      %s31 = scalar_lea.vmem %s1, %s30
      %s32 = sadd.s32 0, 0
      %p33 = scmp.lt.s32.totalorder %s32, 0
      %s34 = scalar_select %p33, %s32, 0
      %s35 = smul.u32 3, %s34
    $region9: #{tpu_custom_call.1} parent=1 // pred_fallthru
      _
    %s36 = sadd.s32 0, 0
    %p37 = scmp.lt.s32.totalorder %s36, 0
    %s38 = scalar_select %p37, %s36, 0
    %s39 = smul.u32 3, %s38
    %p40 = scmp.lt.s32.totalorder %s39, 2
    %s41 = scalar_select %p40, %s39, 2
    %s42 = smul.addr %s41, 8
    %s43 = scalar_lea.vmem %s0, %s42
    %s44 = sadd.s32 0, 0
    %p45 = scmp.lt.s32.totalorder %s44, 0
    %s46 = scalar_select %p45, %s44, 0
    %s47 = smul.u32 3, %s46
    %p48 = scmp.lt.s32.totalorder %s47, 2
    %s49 = scalar_select %p48, %s47, 2
    %s50 = smul.addr %s49, 8
    %s51 = scalar_lea.vmem %s1, %s50
    %s52 = sadd.s32 0, 0
    %p53 = scmp.lt.s32.totalorder %s52, 0
    %s54 = scalar_select %p53, %s52, 0
    %s55 = smul.u32 3, %s54
    %p56 = scmp.lt.s32.totalorder %s55, 2
    %s57 = scalar_select %p56, %s55, 2
    %s58 = smul.addr %s57, 8
    %s59 = scalar_lea.vmem %s0, %s58
    %s60 = sadd.s32 0, 0
    %p61 = scmp.lt.s32.totalorder %s60, 0
    %s62 = scalar_select %p61, %s60, 0
    %s63 = smul.u32 3, %s62
    %s64 = sadd.s32 0, 0
    %p65 = scmp.lt.s32.totalorder %s64, 0
    %s66 = scalar_select %p65, %s64, 0
    %s67 = smul.u32 3, %s66
    %p68 = scmp.lt.s32.totalorder %s67, 2
    %s69 = scalar_select %p68, %s67, 2
    %s70 = smul.addr %s69, 8
    %s71 = scalar_lea.vmem %s1, %s70
    %s72 = sadd.s32 0, 0
    %p73 = scmp.lt.s32.totalorder %s72, 0
    %s74 = scalar_select %p73, %s72, 0
    %s75 = smul.u32 3, %s74
    %p76 = scmp.eq.s32.totalorder 0, 0
    // Predicated region
    $region10: #{tpu_custom_call.1} parent=1 // pred_check
      %p77 = pneg %p76
    $region11: #{tpu_custom_call.1} parent=1 // pred_check_branch
      %79 = sbr.rel (%p77) target = $region13
    $region12: #{tpu_custom_call.1} parent=1 // pred_region
      %vm80 = vcmask 7168
      %81 = vst.msk [vmem:[#allocation2] sm:$0xff] %vm80, 0.0
      %82 = vst.msk [vmem:[#allocation2 + $0x8] sm:$0xff] %vm80, 0.0
      %vm83 = vcmask 3072
      %84 = vst.msk [vmem:[#allocation2 + $0x10] sm:$0xf] %vm83, 0.0
    $region13: #{tpu_custom_call.1} parent=1 // pred_fallthru
      _
    %v85 = vld [vmem:[%s59] sm:$0xff]
    %v86 = vld [vmem:[%s59 + $0x8] sm:$0xff]
    %v87 = vld [vmem:[%s59 + $0x10] sm:$0xf]
    %v88 = vld [vmem:[%s71] sm:$0xff]
    %v89 = vld [vmem:[%s71 + $0x8] sm:$0xff]
    %v90 = vld [vmem:[%s71 + $0x10] sm:$0xf]
    %s91 = sadd.s32 0, 0
    %s92 = smul.u32 %s91, 20
    %v93 = vlaneseq
    %v94 = vshrl.u32 %v93, 7
    %v95 = vadd.s32 %v94, 8
    %v96 = vadd.s32 %v94, 16
    %v97 = vstv %s92
    %v98 = vadd.s32 %v97, %v94
    %v99 = vadd.s32 %v97, %v95
    %v100 = vadd.s32 %v97, %v96
    %vm101 = vcmp.lt.s32.totalorder %v98, 20
    %vm102 = vcmp.lt.s32.totalorder %v99, 20
    %vm103 = vcmp.lt.s32.totalorder %v100, 20
    %vm104 = vcmask 80896
    %v105 = vsel %vm104, %v85, -inf
    %106 = vmax.xlane.f32.xlu0 %v105
    %v107 = vpop.xlane.xlu0 %106
    %v108 = vsel %vm104, %v86, -inf
    %109 = vmax.xlane.f32.xlu0 %v108
    %v110 = vpop.xlane.xlu0 %109
    %vm111 = vcmask 76800
    %v112 = vsel %vm111, %v87, -inf
    %113 = vmax.xlane.f32.xlu0 %v112
    %v114 = vpop.xlane.xlu0 %113
    %v115 = vsub.f32 %v85, %v107
    %v116 = vsub.f32 %v86, %v110
    %v117 = vsub.f32 %v87, %v114
    %v118 = vmul.f32 %v115, 1.442695
    %v119 = vpow.pop %v118
    %v120 = vmul.f32 %v116, 1.442695
    %v121 = vpow.pop %v120
    %v122 = vmul.f32 %v117, 1.442695
    %v123 = vpow.pop %v122
    %v124 = vsel %vm104, %v119, 0.0
    %125 = vadd.xlane.f32.xlu0 %v124
    %v126 = vpop.xlane.xlu0 %125
    %v127 = vsel %vm104, %v121, 0.0
    %128 = vadd.xlane.f32.xlu0 %v127
    %v129 = vpop.xlane.xlu0 %128
    %v130 = vsel %vm111, %v123, 0.0
    %131 = vadd.xlane.f32.xlu0 %v130
    %v132 = vpop.xlane.xlu0 %131
    %v133 = vlog2.pop %v126
    %v134 = vmul.f32 %v133, 0.6931472
    %v135 = vlog2.pop %v129
    %v136 = vmul.f32 %v135, 0.6931472
    %v137 = vlog2.pop %v132
    %v138 = vmul.f32 %v137, 0.6931472
    %v139 = vsub.f32 %v115, %v134
    %v140 = vsub.f32 %v116, %v136
    %v141 = vsub.f32 %v117, %v138
    %v142 = vrcp.pop %v126
    %v143 = vmul.f32 1.0, %v142
    %v144 = vrcp.pop %v129
    %v145 = vmul.f32 1.0, %v144
    %v146 = vrcp.pop %v132
    %v147 = vmul.f32 1.0, %v146
    %v148 = vmul.f32 %v119, %v143
    %v149 = vmul.f32 %v121, %v145
    %v150 = vmul.f32 %v123, %v147
    %v151 = vsub.f32 1.0, %v148
    %v152 = vsub.f32 1.0, %v149
    %v153 = vsub.f32 1.0, %v150
    %v154 = vmax.f32 %v151, 0.0
    %v155 = vmax.f32 %v152, 0.0
    %v156 = vmax.f32 %v153, 0.0
    %v157 = vmul.f32 %v154, %v154
    %v158 = vmul.f32 %v155, %v155
    %v159 = vmul.f32 %v156, %v156
    %v160 = vsub.f32 0.0, %v157
    %v161 = vsub.f32 0.0, %v158
    %v162 = vsub.f32 0.0, %v159
    %v163 = vmul.f32 %v160, %v139
    %v164 = vmul.f32 %v161, %v140
    %v165 = vmul.f32 %v162, %v141
    %v166 = vsel %vm104, %v163, 0.0
    %167 = vadd.xlane.f32.xlu0 %v166
    %v168 = vpop.xlane.xlu0 %167
    %v169 = vsel %vm104, %v164, 0.0
    %170 = vadd.xlane.f32.xlu0 %v169
    %v171 = vpop.xlane.xlu0 %170
    %v172 = vsel %vm111, %v165, 0.0
    %173 = vadd.xlane.f32.xlu0 %v172
    %v174 = vpop.xlane.xlu0 %173
    %v175 = vlaneseq
    %v176 = vand.u32 %v175, 127
    %177 = vset.pattern.permute.xlu0 0
    %178 = vperm.xlu0 %177, %v88
    %v179 = vpop.permute.xlu0 %178
    %180 = vset.pattern.permute.xlu0 0
    %181 = vperm.xlu0 %180, %v89
    %v182 = vpop.permute.xlu0 %181
    %183 = vset.pattern.permute.xlu0 0
    %184 = vperm.xlu0 %183, %v90
    %v185 = vpop.permute.xlu0 %184
    %vm186 = vcmp.eq.s32.totalorder %v176, %v179
    %vm187 = vcmp.eq.s32.totalorder %v176, %v182
    %vm188 = vcmp.eq.s32.totalorder %v176, %v185
    %v189 = vsel %vm186, %v139, 0.0
    %v190 = vsel %vm187, %v140, 0.0
    %v191 = vsel %vm188, %v141, 0.0
    %v192 = vsel %vm104, %v189, 0.0
    %193 = vadd.xlane.f32.xlu0 %v192
    %v194 = vpop.xlane.xlu0 %193
    %v195 = vsel %vm104, %v190, 0.0
    %196 = vadd.xlane.f32.xlu0 %v195
    %v197 = vpop.xlane.xlu0 %196
    %v198 = vsel %vm111, %v191, 0.0
    %199 = vadd.xlane.f32.xlu0 %v198
    %v200 = vpop.xlane.xlu0 %199
    %v201 = vmul.f32 %v194, 1.442695
    %v202 = vpow.pop %v201
    %v203 = vmul.f32 %v197, 1.442695
    %v204 = vpow.pop %v203
    %v205 = vmul.f32 %v200, 1.442695
    %v206 = vpow.pop %v205
    %v207 = vsub.f32 1.0, %v202
    %v208 = vsub.f32 1.0, %v204
    %v209 = vsub.f32 1.0, %v206
    %v210 = vmax.f32 %v207, 0.0
    %v211 = vmax.f32 %v208, 0.0
    %v212 = vmax.f32 %v209, 0.0
    %v213 = vmul.f32 %v210, %v210
    %v214 = vmul.f32 %v211, %v211
    %v215 = vmul.f32 %v212, %v212
    %v216 = vsub.f32 0.0, %v213
    %v217 = vsub.f32 0.0, %v214
    %v218 = vsub.f32 0.0, %v215
    %v219 = vmul.f32 %v216, %v194
    %v220 = vmul.f32 %v217, %v197
    %v221 = vmul.f32 %v218, %v200
    %v222 = vrcp.pop %v168
    %v223 = vmul.f32 %v219, %v222
    %v224 = vrcp.pop %v171
    %v225 = vmul.f32 %v220, %v224
    %v226 = vrcp.pop %v174
    %v227 = vmul.f32 %v221, %v226
    %v228 = vsel %vm101, %v223, 0.0
    %v229 = vsel %vm102, %v225, 0.0
    %v230 = vsel %vm103, %v227, 0.0
    %v231 = vld [vmem:[#allocation2] sm:$0xff]
    %v232 = vld [vmem:[#allocation2 + $0x8] sm:$0xff]
    %v233 = vld [vmem:[#allocation2 + $0x10] sm:$0xf]
    %v234 = vadd.f32 %v231, %v228
    %v235 = vadd.f32 %v232, %v229
    %v236 = vadd.f32 %v233, %v230
    %vm237 = vcmask 7168
    %238 = vst.msk [vmem:[#allocation2] sm:$0xff] %vm237, %v234
    %239 = vst.msk [vmem:[#allocation2 + $0x8] sm:$0xff] %vm237, %v235
    %vm240 = vcmask 3072
    %241 = vst.msk [vmem:[#allocation2 + $0x10] sm:$0xf] %vm240, %v236
    // Predicated region
    $region14: #{tpu_custom_call.1} parent=1 // pred_check
      %p242 = pneg %p76
    $region15: #{tpu_custom_call.1} parent=1 // pred_check_branch
      %244 = sbr.rel (%p242) target = $region17
    $region16: #{tpu_custom_call.1} parent=1 // pred_region
      %v245 = vld [vmem:[#allocation2] sm:$0xff]
      %v246 = vld [vmem:[#allocation2 + $0x8] sm:$0xff]
      %v247 = vld [vmem:[#allocation2 + $0x10] sm:$0xf]
      %v248 = vsel %vm237, %v245, 0.0
      %v249 = vsel %vm237, %v246, 0.0
      %v250 = vadd.f32 %v248, %v249
      %v251 = vsel %vm240, %v247, 0.0
      %v252 = vadd.f32 %v250, %v251
      %253 = vadd.xlane.f32.xlu0 %v252
      %v254 = vpop.xlane.xlu0 %253
      %v255 = vrot.slane %v254, 4
      %v256 = vadd.f32 %v254, %v255
      %v257 = vrot.slane %v256, 2
      %v258 = vadd.f32 %v256, %v257
      %v259 = vrot.slane %v258, 1
      %v260 = vadd.f32 %v258, %v259
      %s261 = vtos %v260
      %v262 = vstv %s261
      %263 = vst [vmem:[#allocation3] sm:$0xff] %v262
    $region17: #{tpu_custom_call.1} parent=1 // pred_fallthru
      _
    // Predicated region
    $region18: #{tpu_custom_call.1} parent=1 // pred_check
      _
    $region19: #{tpu_custom_call.1} parent=1 // pred_check_branch
      %265 = sbr.rel (0) target = $region21
    $region20: #{tpu_custom_call.1} parent=1 // pred_region
      %s267 = ssub.s32 128, 128
      %268 = vsyncadd [#allocation4], %s267
      %s270 = sshll.u32 [#allocation3], 4
      %s271 = int_to_ptr.vmem [resolvable:$true] %s270
      %273 = dma.vmem_to_hbm [thread:$0]  %s271, 128, %s2, [#allocation4]
    $region21: #{tpu_custom_call.1} parent=1 // pred_fallthru
      _
    // Predicated region
    $region22: #{tpu_custom_call.1} parent=1 // pred_check
      _
    $region23: #{tpu_custom_call.1} parent=1 // pred_check_branch
      %275 = sbr.rel (0) target = $region25
    $region24: #{tpu_custom_call.1} parent=1 // pred_region
      %276 = dma.done [#allocation4], 128
    $region25: #{tpu_custom_call.1} parent=1 // pred_fallthru
      _
    %277 = vsyncpa [#allocation4], 1

</llo_original>
